<compile_context>
chip_gen: v7x
topology: tpu7x:2x2x1
jax: 0.10.0
libtpu: 0.0.40
codegen_flags: <defaults>
</compile_context>

<pallas_src>
import functools

import jax
import jax.numpy as jnp
from jax.experimental import pallas as pl
from jax.experimental.pallas import tpu as pltpu

LANE = 128
BF16_SUBLANE = 16  # bf16 minimum sublane tile height


def _round_up(n, m):
    return ((n + m - 1) // m) * m


def _choose_tile(B, row_tile):
    """Row-tile heuristic: large tiles (multiple of 256) for big batches,
    >= 2 grid steps when possible (v7x megacore), multiple of 16 always."""
    row_tile = max(BF16_SUBLANE, _round_up(row_tile, BF16_SUBLANE))
    b16 = _round_up(B, BF16_SUBLANE)
    if b16 <= 256:
        return min(b16, row_tile)
    half = _round_up(pl.cdiv(b16, 2), 256)
    return max(256, min(row_tile, half))


def densenet_kernel(x_ref, w_ref, b_ref, o_ref):
    """Fused 4-layer MLP on one row tile.

    x_ref: (TILE, s_pad)  bf16  activations (feature dim padded to mult. of 16)
    w_ref: (4*LP, LP)     bf16  4 stacked, zero-padded (in -> out) weight blocks
    b_ref: (8, LP)        f32   4 bias rows (+4 zero rows of sublane padding)
    o_ref: (TILE, a_dim)  f32   narrow output (only real lanes written back)
    """
    lp = w_ref.shape[1]
    s_pad = x_ref.shape[1]
    a_dim = o_ref.shape[1]

    bias = b_ref[...]                                   # (8, lp) f32, one load
    h = x_ref[...]                                      # (TILE, s_pad) bf16

    # Layer 1: narrow-K MXU pass (K = s_pad), f32 accumulate, bias+ReLU on VPU.
    acc = jnp.dot(h, w_ref[0:s_pad, :], preferred_element_type=jnp.float32)
    acc = jnp.maximum(acc + bias[0:1, :], 0.0)
    h = acc.astype(jnp.bfloat16)

    # Layers 2-3.
    for layer in (1, 2):
        w = w_ref[layer * lp:(layer + 1) * lp, :]       # (lp, lp) bf16
        acc = jnp.dot(h, w, preferred_element_type=jnp.float32)
        acc = jnp.maximum(acc + bias[layer:layer + 1, :], 0.0)
        h = acc.astype(jnp.bfloat16)

    # Output layer: identity activation; store only the real a_dim lanes.
    out = jnp.dot(h, w_ref[3 * lp:4 * lp, :], preferred_element_type=jnp.float32)
    out = out + bias[3:4, :]
    o_ref[...] = out[:, :a_dim].astype(o_ref.dtype)


def _pack_params(params, lp):
    """Pack 4 layers into one bf16 weight slab and one f32 (8, lp) bias slab."""
    ws, bs = [], []
    for i in range(1, 5):
        w = params[f"w{i}"]                             # (in, out) f32
        b = params[f"b{i}"]                             # (out,)    f32
        w_p = jnp.zeros((lp, lp), jnp.float32).at[:w.shape[0], :w.shape[1]].set(w)
        b_p = jnp.zeros((lp,), jnp.float32).at[:b.shape[0]].set(b)
        ws.append(w_p)
        bs.append(b_p)
    w_packed = jnp.concatenate(ws, axis=0).astype(jnp.bfloat16)        # (4*lp, lp)
    b_packed = jnp.zeros((8, lp), jnp.float32).at[:4, :].set(jnp.stack(bs, 0))
    return w_packed, b_packed


@functools.partial(jax.jit, static_argnames=("row_tile",))
def densenet_forward(x, params, *, row_tile=1024):
    """x: (B, s_dim) f32. params: dict of w1..w4 (in,out) and b1..b4 (out,)."""
    B, s_dim = x.shape
    hidden = params["w1"].shape[1]
    a_dim = params["w4"].shape[1]

    lp = _round_up(max(s_dim, hidden, a_dim), LANE)     # lane width of W slabs
    s_pad = _round_up(s_dim, BF16_SUBLANE)              # padded input features
    tile = _choose_tile(B, row_tile)
    b_pad = _round_up(B, tile)
    num_steps = b_pad // tile

    w_packed, b_packed = _pack_params(params, lp)

    # Fused pad + bf16 cast of the activations (no padded-f32 staging slab).
    x_bf = x.astype(jnp.bfloat16)
    if b_pad == B and s_pad == s_dim:
        x_p = x_bf
    else:
        x_p = jnp.zeros((b_pad, s_pad), jnp.bfloat16).at[:B, :s_dim].set(x_bf)

    # Advisory cost for XLA's scheduler (real HBM bytes / MXU flops).
    flops = b_pad * 2 * (s_pad * lp + 3 * lp * lp)
    bytes_accessed = (b_pad * s_pad * 2          # x (bf16)
                      + b_pad * a_dim * 4        # out (f32, narrow)
                      + 4 * lp * lp * 2          # weights (bf16)
                      + 8 * lp * 4)              # biases (f32)
    cost = pl.CostEstimate(flops=flops, transcendentals=0,
                           bytes_accessed=bytes_accessed)

    # Deeper input buffering only pays off on long grids.
    x_spec_kwargs = {}
    if num_steps >= 4:
        x_spec_kwargs["pipeline_mode"] = pl.Buffered(3)
    x_spec = pl.BlockSpec((tile, s_pad), lambda i: (i, 0), **x_spec_kwargs)

    out = pl.pallas_call(
        densenet_kernel,
        out_shape=jax.ShapeDtypeStruct((b_pad, a_dim), jnp.float32),
        grid=(num_steps,),
        in_specs=[
            x_spec,                                         # row tile of x
            pl.BlockSpec((4 * lp, lp), lambda i: (0, 0)),   # weights: VMEM-resident
            pl.BlockSpec((8, lp), lambda i: (0, 0)),        # biases:  VMEM-resident
        ],
        out_specs=pl.BlockSpec((tile, a_dim), lambda i: (i, 0)),
        compiler_params=pltpu.CompilerParams(
            dimension_semantics=("parallel",)),             # 2 TCs on v7x
        cost_estimate=cost,
    )(x_p, w_packed, b_packed)

    return out[:B, :] if b_pad != B else out


# ----------------------------------------------------------------------------
# Parameter construction mirroring the PyTorch module's init, and a
# matched-precision JAX reference for validation.
# ----------------------------------------------------------------------------

def fanin_init_jax(key, shape):
    """fanin_init: uniform(-1/sqrt(fanin), 1/sqrt(fanin)) on (out, in)."""
    fanin = shape[1]
    v = 1.0 / jnp.sqrt(jnp.float32(fanin))
    return jax.random.uniform(key, shape, jnp.float32, -v, v)


def make_params(key, s_dim, hidden_dim, a_dim):
    keys = jax.random.split(key, 8)
    # PyTorch Linear weight is (out, in); transpose to (in, out) for x @ W.
    w1 = fanin_init_jax(keys[0], (hidden_dim, s_dim)).T
    b1 = jax.random.uniform(keys[1], (hidden_dim,), jnp.float32,
                            -1.0 / jnp.sqrt(float(s_dim)), 1.0 / jnp.sqrt(float(s_dim)))
    w2 = fanin_init_jax(keys[2], (hidden_dim, hidden_dim)).T
    b2 = jax.random.uniform(keys[3], (hidden_dim,), jnp.float32,
                            -1.0 / jnp.sqrt(float(hidden_dim)), 1.0 / jnp.sqrt(float(hidden_dim)))
    w3 = jax.random.uniform(keys[4], (hidden_dim, hidden_dim), jnp.float32, -0.003, 0.003).T
    b3 = jax.random.uniform(keys[5], (hidden_dim,), jnp.float32,
                            -1.0 / jnp.sqrt(float(hidden_dim)), 1.0 / jnp.sqrt(float(hidden_dim)))
    w4 = jax.random.uniform(keys[6], (a_dim, hidden_dim), jnp.float32,
                            -1.0 / jnp.sqrt(float(hidden_dim)), 1.0 / jnp.sqrt(float(hidden_dim))).T
    b4 = jax.random.uniform(keys[7], (a_dim,), jnp.float32,
                            -1.0 / jnp.sqrt(float(hidden_dim)), 1.0 / jnp.sqrt(float(hidden_dim)))
    return {"w1": w1, "b1": b1, "w2": w2, "b2": b2,
            "w3": w3, "b3": b3, "w4": w4, "b4": b4}


def densenet_ref(x, p):
    """Matched-precision reference: bf16 matmul operands, f32 accumulate."""
    def dot(a, w):
        return jnp.dot(a.astype(jnp.bfloat16), w.astype(jnp.bfloat16),
                       preferred_element_type=jnp.float32)
    h = jnp.maximum(dot(x, p["w1"]) + p["b1"], 0.0)
    h = jnp.maximum(dot(h, p["w2"]) + p["b2"], 0.0)
    h = jnp.maximum(dot(h, p["w3"]) + p["b3"], 0.0)
    return dot(h, p["w4"]) + p["b4"]


if __name__ == "__main__":
    # Small shapes consistent with the module: x is (batch, s_dim).
    B, S_DIM, HIDDEN, A_DIM = 256, 16, 32, 4

    key = jax.random.PRNGKey(0)
    k_x, k_p = jax.random.split(key)
    x = jax.random.normal(k_x, (B, S_DIM), jnp.float32)
    params = make_params(k_p, S_DIM, HIDDEN, A_DIM)

    out = densenet_forward(x, params)
    out = jax.block_until_ready(out)

    ref = densenet_ref(x, params)
    assert out.shape == (B, A_DIM), out.shape
    assert jnp.allclose(out, ref, atol=2e-3, rtol=2e-2), "mismatch vs JAX reference"

    print("KERNEL_OK")
</pallas_src>

<mosaic_0001>
module attributes {stable_mosaic.version = 11 : i64} {
  func.func @densenet_kernel(%arg0: i32, %arg1: memref<256x16xbf16, #tpu.memory_space<vmem>>, %arg2: memref<512x128xbf16, #tpu.memory_space<vmem>>, %arg3: memref<8x128xf32, #tpu.memory_space<vmem>>, %arg4: memref<256x4xf32, #tpu.memory_space<vmem>>) attributes {dimension_semantics = [#tpu.dimension_semantics<parallel>], iteration_bounds = array<i64: 1>, scalar_prefetch = 0 : i64, scratch_operands = 0 : i64, tpu.core_type = #tpu.core_type<tc>, window_params = [{transform_indices = @transform_0, window_bounds = array<i64: 256, 16>}, {pipeline_mode = #tpu.pipeline_mode<synchronous>, transform_indices = @transform_1, window_bounds = array<i64: 512, 128>}, {pipeline_mode = #tpu.pipeline_mode<synchronous>, transform_indices = @transform_2, window_bounds = array<i64: 8, 128>}, {transform_indices = @transform_3, window_bounds = array<i64: 256, 4>}]} {
    %c0 = arith.constant 0 : index
    %c0_0 = arith.constant 0 : index
    %0 = vector.load %arg3[%c0, %c0_0] : memref<8x128xf32, #tpu.memory_space<vmem>>, vector<8x128xf32>
    %c0_1 = arith.constant 0 : index
    %c0_2 = arith.constant 0 : index
    %1 = vector.load %arg1[%c0_1, %c0_2] : memref<256x16xbf16, #tpu.memory_space<vmem>>, vector<256x16xbf16>
    %c0_3 = arith.constant 0 : index
    %c0_4 = arith.constant 0 : index
    %2 = vector.load %arg2[%c0_3, %c0_4] : memref<512x128xbf16, #tpu.memory_space<vmem>>, vector<16x128xbf16>
    %cst = arith.constant dense<0.000000e+00> : vector<256x128xf32>
    %3 = tpu.matmul %1, %2, %cst {dimension_numbers = #tpu.dot_dimension_numbers<[1], [0], [0], [1], [0, 0, 1, 1], [], []>} : vector<256x16xbf16>, vector<16x128xbf16>, vector<256x128xf32> -> vector<256x128xf32>
    %4 = vector.extract_strided_slice %0 {offsets = [0, 0], sizes = [1, 128], strides = [1, 1]} : vector<8x128xf32> to vector<1x128xf32>
    %5 = vector.broadcast %4 : vector<1x128xf32> to vector<256x128xf32>
    %6 = arith.addf %3, %5 : vector<256x128xf32>
    %cst_5 = arith.constant 0.000000e+00 : f32
    %7 = vector.broadcast %cst_5 : f32 to vector<256x128xf32>
    %8 = arith.maximumf %6, %7 : vector<256x128xf32>
    %9 = arith.truncf %8 : vector<256x128xf32> to vector<256x128xbf16>
    %c128 = arith.constant 128 : index
    %c0_6 = arith.constant 0 : index
    %10 = vector.load %arg2[%c128, %c0_6] : memref<512x128xbf16, #tpu.memory_space<vmem>>, vector<128x128xbf16>
    %cst_7 = arith.constant dense<0.000000e+00> : vector<256x128xf32>
    %11 = tpu.matmul %9, %10, %cst_7 {dimension_numbers = #tpu.dot_dimension_numbers<[1], [0], [0], [1], [0, 0, 1, 1], [], []>} : vector<256x128xbf16>, vector<128x128xbf16>, vector<256x128xf32> -> vector<256x128xf32>
    %12 = vector.extract_strided_slice %0 {offsets = [1, 0], sizes = [1, 128], strides = [1, 1]} : vector<8x128xf32> to vector<1x128xf32>
    %13 = vector.broadcast %12 : vector<1x128xf32> to vector<256x128xf32>
    %14 = arith.addf %11, %13 : vector<256x128xf32>
    %cst_8 = arith.constant 0.000000e+00 : f32
    %15 = vector.broadcast %cst_8 : f32 to vector<256x128xf32>
    %16 = arith.maximumf %14, %15 : vector<256x128xf32>
    %17 = arith.truncf %16 : vector<256x128xf32> to vector<256x128xbf16>
    %c256 = arith.constant 256 : index
    %c0_9 = arith.constant 0 : index
    %18 = vector.load %arg2[%c256, %c0_9] : memref<512x128xbf16, #tpu.memory_space<vmem>>, vector<128x128xbf16>
    %cst_10 = arith.constant dense<0.000000e+00> : vector<256x128xf32>
    %19 = tpu.matmul %17, %18, %cst_10 {dimension_numbers = #tpu.dot_dimension_numbers<[1], [0], [0], [1], [0, 0, 1, 1], [], []>} : vector<256x128xbf16>, vector<128x128xbf16>, vector<256x128xf32> -> vector<256x128xf32>
    %20 = vector.extract_strided_slice %0 {offsets = [2, 0], sizes = [1, 128], strides = [1, 1]} : vector<8x128xf32> to vector<1x128xf32>
    %21 = vector.broadcast %20 : vector<1x128xf32> to vector<256x128xf32>
    %22 = arith.addf %19, %21 : vector<256x128xf32>
    %cst_11 = arith.constant 0.000000e+00 : f32
    %23 = vector.broadcast %cst_11 : f32 to vector<256x128xf32>
    %24 = arith.maximumf %22, %23 : vector<256x128xf32>
    %25 = arith.truncf %24 : vector<256x128xf32> to vector<256x128xbf16>
    %c384 = arith.constant 384 : index
    %c0_12 = arith.constant 0 : index
    %26 = vector.load %arg2[%c384, %c0_12] : memref<512x128xbf16, #tpu.memory_space<vmem>>, vector<128x128xbf16>
    %cst_13 = arith.constant dense<0.000000e+00> : vector<256x128xf32>
    %27 = tpu.matmul %25, %26, %cst_13 {dimension_numbers = #tpu.dot_dimension_numbers<[1], [0], [0], [1], [0, 0, 1, 1], [], []>} : vector<256x128xbf16>, vector<128x128xbf16>, vector<256x128xf32> -> vector<256x128xf32>
    %28 = vector.extract_strided_slice %0 {offsets = [3, 0], sizes = [1, 128], strides = [1, 1]} : vector<8x128xf32> to vector<1x128xf32>
    %29 = vector.broadcast %28 : vector<1x128xf32> to vector<256x128xf32>
    %30 = arith.addf %27, %29 : vector<256x128xf32>
    %31 = vector.extract_strided_slice %30 {offsets = [0, 0], sizes = [256, 4], strides = [1, 1]} : vector<256x128xf32> to vector<256x4xf32>
    %c0_14 = arith.constant 0 : index
    %c0_15 = arith.constant 0 : index
    %32 = vector.load %arg4[%c0_14, %c0_15] : memref<256x4xf32, #tpu.memory_space<vmem>>, vector<256x4xf32>
    tpu.vector_store %arg4[%c0_14, %c0_15], %31 {strides = array<i32>} : memref<256x4xf32, #tpu.memory_space<vmem>>, vector<256x4xf32>,
    return
  }
  func.func @transform_0(%arg0: i32) -> (i32, i32) {
    %c0_i32 = arith.constant 0 : i32
    %c0_i32_0 = arith.constant 0 : i32
    return %arg0, %c0_i32 : i32, i32
  }
  func.func @transform_1(%arg0: i32) -> (i32, i32) {
    %c0_i32 = arith.constant 0 : i32
    %c0_i32_0 = arith.constant 0 : i32
    %c0_i32_1 = arith.constant 0 : i32
    return %c0_i32, %c0_i32_0 : i32, i32
  }
  func.func @transform_2(%arg0: i32) -> (i32, i32) {
    %c0_i32 = arith.constant 0 : i32
    %c0_i32_0 = arith.constant 0 : i32
    %c0_i32_1 = arith.constant 0 : i32
    return %c0_i32, %c0_i32_0 : i32, i32
  }
  func.func @transform_3(%arg0: i32) -> (i32, i32) {
    %c0_i32 = arith.constant 0 : i32
    %c0_i32_0 = arith.constant 0 : i32
    return %arg0, %c0_i32 : i32, i32
  }
}

</mosaic_0001>

<llo_original>
// kernel: densenet_forward.1
$region0: #{densenet_forward.1}
  #allocation0 [shape = 'u32[]', space=smem, size = 0x4, offset = 0x4, fixed_abs, tag = 'smem constant byte address 0x4 - core index']
  #allocation1 [shape = 'u32[144,128]{1,0:T(1,128)}', space=vmem, size = 0x12000, scoped, tag = 'internal scratch']
  %s0 = inlined_call_operand.vmem [shape: bf16[256,16], index: 0, kind: input, shape index: {}]
  %s1 = inlined_call_operand.vmem [shape: bf16[512,128], index: 1, kind: input, shape index: {}]
  %s2 = inlined_call_operand.vmem [shape: f32[8,128], index: 2, kind: input, shape index: {}]
  %s3 = inlined_call_operand.vmem [shape: f32[256,4], index: 3, kind: output, shape index: {}]
  %s4 = sld [smem:[#allocation0]]
  $region22: #{densenet_forward.1} parent=0
    _
  %s6 = ssub.s32 1, %s4
  %s7 = scalar_select 0, %s6, %s4
  // Predicated region
  $region2: #{densenet_forward.1} parent=0 // pred_check
    _
  $region3: #{densenet_forward.1} parent=0 // pred_check_branch
    %9 = sbr.rel (0) target = $region5
  $region4: #{densenet_forward.1} parent=0 // pred_region
    _
  $region5: #{densenet_forward.1} parent=0 // pred_fallthru
    _
  // Predicated region
  $region6: #{densenet_forward.1} parent=0 // pred_check
    _
  $region7: #{densenet_forward.1} parent=0 // pred_check_branch
    %11 = sbr.rel (0) target = $region9
  $region8: #{densenet_forward.1} parent=0 // pred_region
    _
  $region9: #{densenet_forward.1} parent=0 // pred_fallthru
    _
  // Predicated region
  $region10: #{densenet_forward.1} parent=0 // pred_check
    _
  $region11: #{densenet_forward.1} parent=0 // pred_check_branch
    %13 = sbr.rel (0) target = $region13
  $region12: #{densenet_forward.1} parent=0 // pred_region
    _
  $region13: #{densenet_forward.1} parent=0 // pred_fallthru
    _
  %v15 = vld [vmem:[%s2] sm:$0xff]
  %v16 = vld [vmem:[%s0] sm:$0xf]
  %v17 = vld [vmem:[%s0 + $0x4] sm:$0xf]
  %v18 = vld [vmem:[%s0 + $0x8] sm:$0xf]
  %v19 = vld [vmem:[%s0 + $0xc] sm:$0xf]
  %v20 = vld [vmem:[%s0 + $0x10] sm:$0xf]
  %v21 = vld [vmem:[%s0 + $0x14] sm:$0xf]
  %v22 = vld [vmem:[%s0 + $0x18] sm:$0xf]
  %v23 = vld [vmem:[%s0 + $0x1c] sm:$0xf]
  %v24 = vld [vmem:[%s0 + $0x20] sm:$0xf]
  %v25 = vld [vmem:[%s0 + $0x24] sm:$0xf]
  %v26 = vld [vmem:[%s0 + $0x28] sm:$0xf]
  %v27 = vld [vmem:[%s0 + $0x2c] sm:$0xf]
  %v28 = vld [vmem:[%s0 + $0x30] sm:$0xf]
  %v29 = vld [vmem:[%s0 + $0x34] sm:$0xf]
  %v30 = vld [vmem:[%s0 + $0x38] sm:$0xf]
  %v31 = vld [vmem:[%s0 + $0x3c] sm:$0xf]
  %v32 = vld [vmem:[%s0 + $0x40] sm:$0xf]
  %v33 = vld [vmem:[%s0 + $0x44] sm:$0xf]
  %v34 = vld [vmem:[%s0 + $0x48] sm:$0xf]
  %v35 = vld [vmem:[%s0 + $0x4c] sm:$0xf]
  %v36 = vld [vmem:[%s0 + $0x50] sm:$0xf]
  %v37 = vld [vmem:[%s0 + $0x54] sm:$0xf]
  %v38 = vld [vmem:[%s0 + $0x58] sm:$0xf]
  %v39 = vld [vmem:[%s0 + $0x5c] sm:$0xf]
  %v40 = vld [vmem:[%s0 + $0x60] sm:$0xf]
  %v41 = vld [vmem:[%s0 + $0x64] sm:$0xf]
  %v42 = vld [vmem:[%s0 + $0x68] sm:$0xf]
  %v43 = vld [vmem:[%s0 + $0x6c] sm:$0xf]
  %v44 = vld [vmem:[%s0 + $0x70] sm:$0xf]
  %v45 = vld [vmem:[%s0 + $0x74] sm:$0xf]
  %v46 = vld [vmem:[%s0 + $0x78] sm:$0xf]
  %v47 = vld [vmem:[%s0 + $0x7c] sm:$0xf]
  %v48 = vld [vmem:[%s1] sm:$0xf]
  %v49 = vld [vmem:[%s1 + $0x4] sm:$0xf]
  %v50 = vlaneseq
  %v51 = vshrl.u32 %v50, 7
  %v52 = vsub.s32 0, %v51
  %v53 = vrot.slane %v15, %v52
  %v86 = vunpack.c.l.b16 %v16
  %v87 = vunpack.c.l.b16 %v17
  %v88 = vunpack.c.l.b16 %v18
  %v89 = vunpack.c.l.b16 %v19
  %v90 = vunpack.c.l.b16 %v20
  %v91 = vunpack.c.l.b16 %v21
  %v92 = vunpack.c.l.b16 %v22
  %v93 = vunpack.c.l.b16 %v23
  %v94 = vunpack.c.l.b16 %v24
  %v95 = vunpack.c.l.b16 %v25
  %v96 = vunpack.c.l.b16 %v26
  %v97 = vunpack.c.l.b16 %v27
  %v98 = vunpack.c.l.b16 %v28
  %v99 = vunpack.c.l.b16 %v29
  %v100 = vunpack.c.l.b16 %v30
  %v101 = vunpack.c.l.b16 %v31
  %v102 = vunpack.c.l.b16 %v32
  %v103 = vunpack.c.l.b16 %v33
  %v104 = vunpack.c.l.b16 %v34
  %v105 = vunpack.c.l.b16 %v35
  %v106 = vunpack.c.l.b16 %v36
  %v107 = vunpack.c.l.b16 %v37
  %v108 = vunpack.c.l.b16 %v38
  %v109 = vunpack.c.l.b16 %v39
  %v110 = vunpack.c.l.b16 %v40
  %v111 = vunpack.c.l.b16 %v41
  %v112 = vunpack.c.l.b16 %v42
  %v113 = vunpack.c.l.b16 %v43
  %v114 = vunpack.c.l.b16 %v44
  %v115 = vunpack.c.l.b16 %v45
  %v116 = vunpack.c.l.b16 %v46
  %v117 = vunpack.c.l.b16 %v47
  %v118 = vpack.c.b16 %v87, %v86
  %v119 = vpack.c.b16 %v89, %v88
  %v120 = vpack.c.b16 %v91, %v90
  %v121 = vpack.c.b16 %v93, %v92
  %v122 = vpack.c.b16 %v95, %v94
  %v123 = vpack.c.b16 %v97, %v96
  %v124 = vpack.c.b16 %v99, %v98
  %v125 = vpack.c.b16 %v101, %v100
  %v126 = vpack.c.b16 %v103, %v102
  %v127 = vpack.c.b16 %v105, %v104
  %v128 = vpack.c.b16 %v107, %v106
  %v129 = vpack.c.b16 %v109, %v108
  %v130 = vpack.c.b16 %v111, %v110
  %v131 = vpack.c.b16 %v113, %v112
  %v132 = vpack.c.b16 %v115, %v114
  %v133 = vpack.c.b16 %v117, %v116
  %v136 = vunpack.c.l.b16 %v48
  %v137 = vunpack.c.l.b16 %v49
  %v138 = vpack.c.b16 %v137, %v136
  %vm140 = vcmask 130048
  %v142 = vsel %vm140, %v118, 0
  %v145 = vsel %vm140, %v119, 0
  %v148 = vsel %vm140, %v120, 0
  %v151 = vsel %vm140, %v121, 0
  %v154 = vsel %vm140, %v122, 0
  %v157 = vsel %vm140, %v123, 0
  %v160 = vsel %vm140, %v124, 0
  %v163 = vsel %vm140, %v125, 0
  %v166 = vsel %vm140, %v126, 0
  %v169 = vsel %vm140, %v127, 0
  %v172 = vsel %vm140, %v128, 0
  %v175 = vsel %vm140, %v129, 0
  %v178 = vsel %vm140, %v130, 0
  %v181 = vsel %vm140, %v131, 0
  %v184 = vsel %vm140, %v132, 0
  %v187 = vsel %vm140, %v133, 0
  %189 = vmatprep.subr.bf16.mxu0 0
  %190 = vmatpush1.bf16.msra.mxu0 %v138
  %191 = vmatprep.subr.bf16.mxu0 0
  %192 = vmatpush1.bf16.msra.mxu0 0
  %193 = vmatprep.subr.bf16.mxu0 0
  %194 = vmatpush1.bf16.msra.mxu0 0
  %195 = vmatprep.subr.bf16.mxu0 0
  %196 = vmatpush1.bf16.msra.mxu0 0
  %197 = vmatprep.subr.bf16.mxu0 0
  %198 = vmatpush1.bf16.msra.mxu0 0
  %199 = vmatprep.subr.bf16.mxu0 0
  %200 = vmatpush1.bf16.msra.mxu0 0
  %201 = vmatprep.subr.bf16.mxu0 0
  %202 = vmatpush1.bf16.msra.mxu0 0
  %203 = vmatprep.subr.bf16.mxu0 0
  %204 = vmatpush1.bf16.msra.mxu0 0
  %205 = vmatprep.subr.bf16.mxu0 0
  %206 = vmatpush1.bf16.msra.mxu0 0
  %207 = vmatprep.subr.bf16.mxu0 0
  %208 = vmatpush1.bf16.msra.mxu0 0
  %209 = vmatprep.subr.bf16.mxu0 0
  %210 = vmatpush1.bf16.msra.mxu0 0
  %211 = vmatprep.subr.bf16.mxu0 0
  %212 = vmatpush1.bf16.msra.mxu0 0
  %213 = vmatprep.subr.bf16.mxu0 0
  %214 = vmatpush1.bf16.msra.mxu0 0
  %215 = vmatprep.subr.bf16.mxu0 0
  %216 = vmatpush1.bf16.msra.mxu0 0
  %217 = vmatprep.subr.bf16.mxu0 0
  %218 = vmatpush1.bf16.msra.mxu0 0
  %219 = vmatprep.subr.bf16.mxu0 0
  %220 = vmatpush1.bf16.msra.mxu0 0
  %221 = vmatprep.mubr.bf16.mxu0 0
  %222 = vmatmul.mubr.bf16.gmra.mrb[0].mxu0 %v142
  %v223 = vpop.f32.mrb[0].mxu0
  %v224 = vadd.f32 %v53, %v223
  %v225 = vpop.f32.mrb[0].mxu0
  %v226 = vpop.f32.mrb[0].mxu0
  %v227 = vadd.f32 %v53, %v226
  %v228 = vpop.f32.mrb[0].mxu0
  %229 = vmatprep.mubr.bf16.mxu0 0
  %230 = vmatmul.mubr.bf16.gmra.mrb[0].mxu0 %v145
  %v231 = vpop.f32.mrb[0].mxu0
  %v232 = vadd.f32 %v53, %v231
  %v233 = vpop.f32.mrb[0].mxu0
  %v234 = vpop.f32.mrb[0].mxu0
  %v235 = vadd.f32 %v53, %v234
  %v236 = vpop.f32.mrb[0].mxu0
  %237 = vmatprep.mubr.bf16.mxu0 0
  %238 = vmatmul.mubr.bf16.gmra.mrb[0].mxu0 %v148
  %v239 = vpop.f32.mrb[0].mxu0
  %v240 = vadd.f32 %v53, %v239
  %v241 = vpop.f32.mrb[0].mxu0
  %v242 = vpop.f32.mrb[0].mxu0
  %v243 = vadd.f32 %v53, %v242
  %v244 = vpop.f32.mrb[0].mxu0
  %245 = vmatprep.mubr.bf16.mxu0 0
  %246 = vmatmul.mubr.bf16.gmra.mrb[0].mxu0 %v151
  %v247 = vpop.f32.mrb[0].mxu0
  %v248 = vadd.f32 %v53, %v247
  %v249 = vpop.f32.mrb[0].mxu0
  %v250 = vpop.f32.mrb[0].mxu0
  %v251 = vadd.f32 %v53, %v250
  %v252 = vpop.f32.mrb[0].mxu0
  %253 = vmatprep.mubr.bf16.mxu0 0
  %254 = vmatmul.mubr.bf16.gmra.mrb[0].mxu0 %v154
  %v255 = vpop.f32.mrb[0].mxu0
  %v256 = vadd.f32 %v53, %v255
  %v257 = vpop.f32.mrb[0].mxu0
  %v258 = vpop.f32.mrb[0].mxu0
  %v259 = vadd.f32 %v53, %v258
  %v260 = vpop.f32.mrb[0].mxu0
  %261 = vmatprep.mubr.bf16.mxu0 0
  %262 = vmatmul.mubr.bf16.gmra.mrb[0].mxu0 %v157
  %v263 = vpop.f32.mrb[0].mxu0
  %v264 = vadd.f32 %v53, %v263
  %v265 = vpop.f32.mrb[0].mxu0
  %v266 = vpop.f32.mrb[0].mxu0
  %v267 = vadd.f32 %v53, %v266
  %v268 = vpop.f32.mrb[0].mxu0
  %269 = vmatprep.mubr.bf16.mxu0 0
  %270 = vmatmul.mubr.bf16.gmra.mrb[0].mxu0 %v160
  %v271 = vpop.f32.mrb[0].mxu0
  %v272 = vadd.f32 %v53, %v271
  %v273 = vpop.f32.mrb[0].mxu0
  %v274 = vpop.f32.mrb[0].mxu0
  %v275 = vadd.f32 %v53, %v274
  %v276 = vpop.f32.mrb[0].mxu0
  %277 = vmatprep.mubr.bf16.mxu0 0
  %278 = vmatmul.mubr.bf16.gmra.mrb[0].mxu0 %v163
  %v279 = vpop.f32.mrb[0].mxu0
  %v280 = vadd.f32 %v53, %v279
  %v281 = vpop.f32.mrb[0].mxu0
  %v282 = vpop.f32.mrb[0].mxu0
  %v283 = vadd.f32 %v53, %v282
  %v284 = vpop.f32.mrb[0].mxu0
  %285 = vmatprep.mubr.bf16.mxu0 0
  %286 = vmatmul.mubr.bf16.gmra.mrb[0].mxu0 %v166
  %v287 = vpop.f32.mrb[0].mxu0
  %v288 = vadd.f32 %v53, %v287
  %v289 = vpop.f32.mrb[0].mxu0
  %v290 = vpop.f32.mrb[0].mxu0
  %v291 = vadd.f32 %v53, %v290
  %v292 = vpop.f32.mrb[0].mxu0
  %293 = vmatprep.mubr.bf16.mxu0 0
  %294 = vmatmul.mubr.bf16.gmra.mrb[0].mxu0 %v169
  %v295 = vpop.f32.mrb[0].mxu0
  %v296 = vadd.f32 %v53, %v295
  %v297 = vpop.f32.mrb[0].mxu0
  %v298 = vpop.f32.mrb[0].mxu0
  %v299 = vadd.f32 %v53, %v298
  %v300 = vpop.f32.mrb[0].mxu0
  %301 = vmatprep.mubr.bf16.mxu0 0
  %302 = vmatmul.mubr.bf16.gmra.mrb[0].mxu0 %v172
  %v303 = vpop.f32.mrb[0].mxu0
  %v304 = vadd.f32 %v53, %v303
  %v305 = vpop.f32.mrb[0].mxu0
  %v306 = vpop.f32.mrb[0].mxu0
  %v307 = vadd.f32 %v53, %v306
  %v308 = vpop.f32.mrb[0].mxu0
  %309 = vmatprep.mubr.bf16.mxu0 0
  %310 = vmatmul.mubr.bf16.gmra.mrb[0].mxu0 %v175
  %v311 = vpop.f32.mrb[0].mxu0
  %v312 = vadd.f32 %v53, %v311
  %v313 = vpop.f32.mrb[0].mxu0
  %v314 = vpop.f32.mrb[0].mxu0
  %v315 = vadd.f32 %v53, %v314
  %v316 = vpop.f32.mrb[0].mxu0
  %317 = vmatprep.mubr.bf16.mxu0 0
  %318 = vmatmul.mubr.bf16.gmra.mrb[0].mxu0 %v178
  %v319 = vpop.f32.mrb[0].mxu0
  %v320 = vadd.f32 %v53, %v319
  %v321 = vpop.f32.mrb[0].mxu0
  %v322 = vpop.f32.mrb[0].mxu0
  %v323 = vadd.f32 %v53, %v322
  %v324 = vpop.f32.mrb[0].mxu0
  %325 = vmatprep.mubr.bf16.mxu0 0
  %326 = vmatmul.mubr.bf16.gmra.mrb[0].mxu0 %v181
  %v327 = vpop.f32.mrb[0].mxu0
  %v328 = vadd.f32 %v53, %v327
  %v329 = vpop.f32.mrb[0].mxu0
  %v330 = vpop.f32.mrb[0].mxu0
  %v331 = vadd.f32 %v53, %v330
  %v332 = vpop.f32.mrb[0].mxu0
  %333 = vmatprep.mubr.bf16.mxu0 0
  %334 = vmatmul.mubr.bf16.gmra.mrb[0].mxu0 %v184
  %v335 = vpop.f32.mrb[0].mxu0
  %v336 = vadd.f32 %v53, %v335
  %v337 = vpop.f32.mrb[0].mxu0
  %v338 = vpop.f32.mrb[0].mxu0
  %v339 = vadd.f32 %v53, %v338
  %v340 = vpop.f32.mrb[0].mxu0
  %341 = vmatprep.mubr.bf16.mxu0 0
  %342 = vmatmul.mubr.bf16.gmra.mrb[0].mxu0 %v187
  %v343 = vpop.f32.mrb[0].mxu0
  %v344 = vadd.f32 %v53, %v343
  %v345 = vpop.f32.mrb[0].mxu0
  %v346 = vpop.f32.mrb[0].mxu0
  %v347 = vadd.f32 %v53, %v346
  %v348 = vpop.f32.mrb[0].mxu0
  %349 = vdwg.mxu0
  %v350 = vmax.f32 %v224, 0.0
  %v351 = vmax.f32 %v227, 0.0
  %v352 = vmax.f32 %v232, 0.0
  %v353 = vmax.f32 %v235, 0.0
  %v354 = vmax.f32 %v240, 0.0
  %v355 = vmax.f32 %v243, 0.0
  %v356 = vmax.f32 %v248, 0.0
  %v357 = vmax.f32 %v251, 0.0
  %v358 = vmax.f32 %v256, 0.0
  %v359 = vmax.f32 %v259, 0.0
  %v360 = vmax.f32 %v264, 0.0
  %v361 = vmax.f32 %v267, 0.0
  %v362 = vmax.f32 %v272, 0.0
  %v363 = vmax.f32 %v275, 0.0
  %v364 = vmax.f32 %v280, 0.0
  %v365 = vmax.f32 %v283, 0.0
  %v366 = vmax.f32 %v288, 0.0
  %v367 = vmax.f32 %v291, 0.0
  %v368 = vmax.f32 %v296, 0.0
  %v369 = vmax.f32 %v299, 0.0
  %v370 = vmax.f32 %v304, 0.0
  %v371 = vmax.f32 %v307, 0.0
  %v372 = vmax.f32 %v312, 0.0
  %v373 = vmax.f32 %v315, 0.0
  %v374 = vmax.f32 %v320, 0.0
  %v375 = vmax.f32 %v323, 0.0
  %v376 = vmax.f32 %v328, 0.0
  %v377 = vmax.f32 %v331, 0.0
  %v378 = vmax.f32 %v336, 0.0
  %v379 = vmax.f32 %v339, 0.0
  %v380 = vmax.f32 %v344, 0.0
  %v381 = vmax.f32 %v347, 0.0
  %v382 = vpack.c.bf16 %v351, %v350
  %v383 = vpack.c.bf16 %v353, %v352
  %v384 = vpack.c.bf16 %v355, %v354
  %v385 = vpack.c.bf16 %v357, %v356
  %v386 = vpack.c.bf16 %v359, %v358
  %v387 = vpack.c.bf16 %v361, %v360
  %v388 = vpack.c.bf16 %v363, %v362
  %v389 = vpack.c.bf16 %v365, %v364
  %v390 = vpack.c.bf16 %v367, %v366
  %v391 = vpack.c.bf16 %v369, %v368
  %v392 = vpack.c.bf16 %v371, %v370
  %v393 = vpack.c.bf16 %v373, %v372
  %v394 = vpack.c.bf16 %v375, %v374
  %v395 = vpack.c.bf16 %v377, %v376
  %v396 = vpack.c.bf16 %v379, %v378
  %v397 = vpack.c.bf16 %v381, %v380
  %v398 = vld [vmem:[%s1 + $0x40] sm:$0xf]
  %v399 = vld [vmem:[%s1 + $0x44] sm:$0xf]
  %v400 = vld [vmem:[%s1 + $0x48] sm:$0xf]
  %v401 = vld [vmem:[%s1 + $0x4c] sm:$0xf]
  %v402 = vld [vmem:[%s1 + $0x50] sm:$0xf]
  %v403 = vld [vmem:[%s1 + $0x54] sm:$0xf]
  %v404 = vld [vmem:[%s1 + $0x58] sm:$0xf]
  %v405 = vld [vmem:[%s1 + $0x5c] sm:$0xf]
  %v406 = vld [vmem:[%s1 + $0x60] sm:$0xf]
  %v407 = vld [vmem:[%s1 + $0x64] sm:$0xf]
  %v408 = vld [vmem:[%s1 + $0x68] sm:$0xf]
  %v409 = vld [vmem:[%s1 + $0x6c] sm:$0xf]
  %v410 = vld [vmem:[%s1 + $0x70] sm:$0xf]
  %v411 = vld [vmem:[%s1 + $0x74] sm:$0xf]
  %v412 = vld [vmem:[%s1 + $0x78] sm:$0xf]
  %v413 = vld [vmem:[%s1 + $0x7c] sm:$0xf]
  %v414 = vlaneseq
  %v415 = vshrl.u32 %v414, 7
  %v416 = vsub.s32 1, %v415
  %v417 = vrot.slane %v15, %v416
  %v434 = vunpack.c.l.b16 %v398
  %v435 = vunpack.c.l.b16 %v399
  %v436 = vunpack.c.l.b16 %v400
  %v437 = vunpack.c.l.b16 %v401
  %v438 = vunpack.c.l.b16 %v402
  %v439 = vunpack.c.l.b16 %v403
  %v440 = vunpack.c.l.b16 %v404
  %v441 = vunpack.c.l.b16 %v405
  %v442 = vunpack.c.l.b16 %v406
  %v443 = vunpack.c.l.b16 %v407
  %v444 = vunpack.c.l.b16 %v408
  %v445 = vunpack.c.l.b16 %v409
  %v446 = vunpack.c.l.b16 %v410
  %v447 = vunpack.c.l.b16 %v411
  %v448 = vunpack.c.l.b16 %v412
  %v449 = vunpack.c.l.b16 %v413
  %v450 = vpack.c.b16 %v435, %v434
  %v451 = vpack.c.b16 %v437, %v436
  %v452 = vpack.c.b16 %v439, %v438
  %v453 = vpack.c.b16 %v441, %v440
  %v454 = vpack.c.b16 %v443, %v442
  %v455 = vpack.c.b16 %v445, %v444
  %v456 = vpack.c.b16 %v447, %v446
  %v457 = vpack.c.b16 %v449, %v448
  %466 = vmatprep.subr.bf16.mxu0 0
  %467 = vmatpush1.bf16.msra.mxu0 %v450
  %468 = vmatprep.subr.bf16.mxu0 0
  %469 = vmatpush1.bf16.msra.mxu0 %v451
  %470 = vmatprep.subr.bf16.mxu0 0
  %471 = vmatpush1.bf16.msra.mxu0 %v452
  %472 = vmatprep.subr.bf16.mxu0 0
  %473 = vmatpush1.bf16.msra.mxu0 %v453
  %474 = vmatprep.subr.bf16.mxu0 0
  %475 = vmatpush1.bf16.msra.mxu0 %v454
  %476 = vmatprep.subr.bf16.mxu0 0
  %477 = vmatpush1.bf16.msra.mxu0 %v455
  %478 = vmatprep.subr.bf16.mxu0 0
  %479 = vmatpush1.bf16.msra.mxu0 %v456
  %480 = vmatprep.subr.bf16.mxu0 0
  %481 = vmatpush1.bf16.msra.mxu0 %v457
  %482 = vmatprep.subr.bf16.mxu0 0
  %483 = vmatpush1.bf16.msra.mxu0 0
  %484 = vmatprep.subr.bf16.mxu0 0
  %485 = vmatpush1.bf16.msra.mxu0 0
  %486 = vmatprep.subr.bf16.mxu0 0
  %487 = vmatpush1.bf16.msra.mxu0 0
  %488 = vmatprep.subr.bf16.mxu0 0
  %489 = vmatpush1.bf16.msra.mxu0 0
  %490 = vmatprep.subr.bf16.mxu0 0
  %491 = vmatpush1.bf16.msra.mxu0 0
  %492 = vmatprep.subr.bf16.mxu0 0
  %493 = vmatpush1.bf16.msra.mxu0 0
  %494 = vmatprep.subr.bf16.mxu0 0
  %495 = vmatpush1.bf16.msra.mxu0 0
  %496 = vmatprep.subr.bf16.mxu0 0
  %497 = vmatpush1.bf16.msra.mxu0 0
  %498 = vmatprep.mubr.bf16.mxu0 0
  %499 = vmatmul.mubr.bf16.gmra.mrb[0].mxu0 %v382
  %v500 = vpop.f32.mrb[0].mxu0
  %v501 = vadd.f32 %v417, %v500
  %v502 = vpop.f32.mrb[0].mxu0
  %v503 = vpop.f32.mrb[0].mxu0
  %v504 = vadd.f32 %v417, %v503
  %v505 = vpop.f32.mrb[0].mxu0
  %506 = vmatprep.mubr.bf16.mxu0 0
  %507 = vmatmul.mubr.bf16.gmra.mrb[0].mxu0 %v383
  %v508 = vpop.f32.mrb[0].mxu0
  %v509 = vadd.f32 %v417, %v508
  %v510 = vpop.f32.mrb[0].mxu0
  %v511 = vpop.f32.mrb[0].mxu0
  %v512 = vadd.f32 %v417, %v511
  %v513 = vpop.f32.mrb[0].mxu0
  %514 = vmatprep.mubr.bf16.mxu0 0
  %515 = vmatmul.mubr.bf16.gmra.mrb[0].mxu0 %v384
  %v516 = vpop.f32.mrb[0].mxu0
  %v517 = vadd.f32 %v417, %v516
  %v518 = vpop.f32.mrb[0].mxu0
  %v519 = vpop.f32.mrb[0].mxu0
  %v520 = vadd.f32 %v417, %v519
  %v521 = vpop.f32.mrb[0].mxu0
  %522 = vmatprep.mubr.bf16.mxu0 0
  %523 = vmatmul.mubr.bf16.gmra.mrb[0].mxu0 %v385
  %v524 = vpop.f32.mrb[0].mxu0
  %v525 = vadd.f32 %v417, %v524
  %v526 = vpop.f32.mrb[0].mxu0
  %v527 = vpop.f32.mrb[0].mxu0
  %v528 = vadd.f32 %v417, %v527
  %v529 = vpop.f32.mrb[0].mxu0
  %530 = vmatprep.mubr.bf16.mxu0 0
  %531 = vmatmul.mubr.bf16.gmra.mrb[0].mxu0 %v386
  %v532 = vpop.f32.mrb[0].mxu0
  %v533 = vadd.f32 %v417, %v532
  %v534 = vpop.f32.mrb[0].mxu0
  %v535 = vpop.f32.mrb[0].mxu0
  %v536 = vadd.f32 %v417, %v535
  %v537 = vpop.f32.mrb[0].mxu0
  %538 = vmatprep.mubr.bf16.mxu0 0
  %539 = vmatmul.mubr.bf16.gmra.mrb[0].mxu0 %v387
  %v540 = vpop.f32.mrb[0].mxu0
  %v541 = vadd.f32 %v417, %v540
  %v542 = vpop.f32.mrb[0].mxu0
  %v543 = vpop.f32.mrb[0].mxu0
  %v544 = vadd.f32 %v417, %v543
  %v545 = vpop.f32.mrb[0].mxu0
  %546 = vmatprep.mubr.bf16.mxu0 0
  %547 = vmatmul.mubr.bf16.gmra.mrb[0].mxu0 %v388
  %v548 = vpop.f32.mrb[0].mxu0
  %v549 = vadd.f32 %v417, %v548
  %v550 = vpop.f32.mrb[0].mxu0
  %v551 = vpop.f32.mrb[0].mxu0
  %v552 = vadd.f32 %v417, %v551
  %v553 = vpop.f32.mrb[0].mxu0
  %554 = vmatprep.mubr.bf16.mxu0 0
  %555 = vmatmul.mubr.bf16.gmra.mrb[0].mxu0 %v389
  %v556 = vpop.f32.mrb[0].mxu0
  %v557 = vadd.f32 %v417, %v556
  %v558 = vpop.f32.mrb[0].mxu0
  %v559 = vpop.f32.mrb[0].mxu0
  %v560 = vadd.f32 %v417, %v559
  %v561 = vpop.f32.mrb[0].mxu0
  %562 = vmatprep.mubr.bf16.mxu0 0
  %563 = vmatmul.mubr.bf16.gmra.mrb[0].mxu0 %v390
  %v564 = vpop.f32.mrb[0].mxu0
  %v565 = vadd.f32 %v417, %v564
  %v566 = vpop.f32.mrb[0].mxu0
  %v567 = vpop.f32.mrb[0].mxu0
  %v568 = vadd.f32 %v417, %v567
  %v569 = vpop.f32.mrb[0].mxu0
  %570 = vmatprep.mubr.bf16.mxu0 0
  %571 = vmatmul.mubr.bf16.gmra.mrb[0].mxu0 %v391
  %v572 = vpop.f32.mrb[0].mxu0
  %v573 = vadd.f32 %v417, %v572
  %v574 = vpop.f32.mrb[0].mxu0
  %v575 = vpop.f32.mrb[0].mxu0
  %v576 = vadd.f32 %v417, %v575
  %v577 = vpop.f32.mrb[0].mxu0
  %578 = vmatprep.mubr.bf16.mxu0 0
  %579 = vmatmul.mubr.bf16.gmra.mrb[0].mxu0 %v392
  %v580 = vpop.f32.mrb[0].mxu0
  %v581 = vadd.f32 %v417, %v580
  %v582 = vpop.f32.mrb[0].mxu0
  %v583 = vpop.f32.mrb[0].mxu0
  %v584 = vadd.f32 %v417, %v583
  %v585 = vpop.f32.mrb[0].mxu0
  %586 = vmatprep.mubr.bf16.mxu0 0
  %587 = vmatmul.mubr.bf16.gmra.mrb[0].mxu0 %v393
  %v588 = vpop.f32.mrb[0].mxu0
  %v589 = vadd.f32 %v417, %v588
  %v590 = vpop.f32.mrb[0].mxu0
  %v591 = vpop.f32.mrb[0].mxu0
  %v592 = vadd.f32 %v417, %v591
  %v593 = vpop.f32.mrb[0].mxu0
  %594 = vmatprep.mubr.bf16.mxu0 0
  %595 = vmatmul.mubr.bf16.gmra.mrb[0].mxu0 %v394
  %v596 = vpop.f32.mrb[0].mxu0
  %v597 = vadd.f32 %v417, %v596
  %v598 = vpop.f32.mrb[0].mxu0
  %v599 = vpop.f32.mrb[0].mxu0
  %v600 = vadd.f32 %v417, %v599
  %v601 = vpop.f32.mrb[0].mxu0
  %602 = vmatprep.mubr.bf16.mxu0 0
  %603 = vmatmul.mubr.bf16.gmra.mrb[0].mxu0 %v395
  %v604 = vpop.f32.mrb[0].mxu0
  %v605 = vadd.f32 %v417, %v604
  %v606 = vpop.f32.mrb[0].mxu0
  %v607 = vpop.f32.mrb[0].mxu0
  %v608 = vadd.f32 %v417, %v607
  %v609 = vpop.f32.mrb[0].mxu0
  %610 = vmatprep.mubr.bf16.mxu0 0
  %611 = vmatmul.mubr.bf16.gmra.mrb[0].mxu0 %v396
  %v612 = vpop.f32.mrb[0].mxu0
  %v613 = vadd.f32 %v417, %v612
  %v614 = vpop.f32.mrb[0].mxu0
  %v615 = vpop.f32.mrb[0].mxu0
  %v616 = vadd.f32 %v417, %v615
  %v617 = vpop.f32.mrb[0].mxu0
  %618 = vmatprep.mubr.bf16.mxu0 0
  %619 = vmatmul.mubr.bf16.gmra.mrb[0].mxu0 %v397
  %v620 = vpop.f32.mrb[0].mxu0
  %v621 = vadd.f32 %v417, %v620
  %v622 = vpop.f32.mrb[0].mxu0
  %v623 = vpop.f32.mrb[0].mxu0
  %v624 = vadd.f32 %v417, %v623
  %v625 = vpop.f32.mrb[0].mxu0
  %626 = vdwg.mxu0
  %v627 = vmax.f32 %v501, 0.0
  %v628 = vmax.f32 %v504, 0.0
  %v629 = vmax.f32 %v509, 0.0
  %v630 = vmax.f32 %v512, 0.0
  %v631 = vmax.f32 %v517, 0.0
  %v632 = vmax.f32 %v520, 0.0
  %v633 = vmax.f32 %v525, 0.0
  %v634 = vmax.f32 %v528, 0.0
  %v635 = vmax.f32 %v533, 0.0
  %v636 = vmax.f32 %v536, 0.0
  %v637 = vmax.f32 %v541, 0.0
  %v638 = vmax.f32 %v544, 0.0
  %v639 = vmax.f32 %v549, 0.0
  %v640 = vmax.f32 %v552, 0.0
  %v641 = vmax.f32 %v557, 0.0
  %v642 = vmax.f32 %v560, 0.0
  %v643 = vmax.f32 %v565, 0.0
  %v644 = vmax.f32 %v568, 0.0
  %v645 = vmax.f32 %v573, 0.0
  %v646 = vmax.f32 %v576, 0.0
  %v647 = vmax.f32 %v581, 0.0
  %v648 = vmax.f32 %v584, 0.0
  %v649 = vmax.f32 %v589, 0.0
  %v650 = vmax.f32 %v592, 0.0
  %v651 = vmax.f32 %v597, 0.0
  %v652 = vmax.f32 %v600, 0.0
  %v653 = vmax.f32 %v605, 0.0
  %v654 = vmax.f32 %v608, 0.0
  %v655 = vmax.f32 %v613, 0.0
  %v656 = vmax.f32 %v616, 0.0
  %v657 = vmax.f32 %v621, 0.0
  %v658 = vmax.f32 %v624, 0.0
  %v659 = vpack.c.bf16 %v628, %v627
  %v660 = vpack.c.bf16 %v630, %v629
  %v661 = vpack.c.bf16 %v632, %v631
  %v662 = vpack.c.bf16 %v634, %v633
  %v663 = vpack.c.bf16 %v636, %v635
  %v664 = vpack.c.bf16 %v638, %v637
  %v665 = vpack.c.bf16 %v640, %v639
  %v666 = vpack.c.bf16 %v642, %v641
  %v667 = vpack.c.bf16 %v644, %v643
  %v668 = vpack.c.bf16 %v646, %v645
  %v669 = vpack.c.bf16 %v648, %v647
  %v670 = vpack.c.bf16 %v650, %v649
  %v671 = vpack.c.bf16 %v652, %v651
  %v672 = vpack.c.bf16 %v654, %v653
  %v673 = vpack.c.bf16 %v656, %v655
  %v674 = vpack.c.bf16 %v658, %v657
  %v675 = vld [vmem:[%s1 + $0x80] sm:$0xf]
  %v676 = vld [vmem:[%s1 + $0x84] sm:$0xf]
  %v677 = vld [vmem:[%s1 + $0x88] sm:$0xf]
  %v678 = vld [vmem:[%s1 + $0x8c] sm:$0xf]
  %v679 = vld [vmem:[%s1 + $0x90] sm:$0xf]
  %v680 = vld [vmem:[%s1 + $0x94] sm:$0xf]
  %v681 = vld [vmem:[%s1 + $0x98] sm:$0xf]
  %v682 = vld [vmem:[%s1 + $0x9c] sm:$0xf]
  %v683 = vld [vmem:[%s1 + $0xa0] sm:$0xf]
  %v684 = vld [vmem:[%s1 + $0xa4] sm:$0xf]
  %v685 = vld [vmem:[%s1 + $0xa8] sm:$0xf]
  %v686 = vld [vmem:[%s1 + $0xac] sm:$0xf]
  %v687 = vld [vmem:[%s1 + $0xb0] sm:$0xf]
  %v688 = vld [vmem:[%s1 + $0xb4] sm:$0xf]
  %v689 = vld [vmem:[%s1 + $0xb8] sm:$0xf]
  %v690 = vld [vmem:[%s1 + $0xbc] sm:$0xf]
  %v691 = vlaneseq
  %v692 = vshrl.u32 %v691, 7
  %v693 = vsub.s32 2, %v692
  %v694 = vrot.slane %v15, %v693
  %v711 = vunpack.c.l.b16 %v675
  %v712 = vunpack.c.l.b16 %v676
  %v713 = vunpack.c.l.b16 %v677
  %v714 = vunpack.c.l.b16 %v678
  %v715 = vunpack.c.l.b16 %v679
  %v716 = vunpack.c.l.b16 %v680
  %v717 = vunpack.c.l.b16 %v681
  %v718 = vunpack.c.l.b16 %v682
  %v719 = vunpack.c.l.b16 %v683
  %v720 = vunpack.c.l.b16 %v684
  %v721 = vunpack.c.l.b16 %v685
  %v722 = vunpack.c.l.b16 %v686
  %v723 = vunpack.c.l.b16 %v687
  %v724 = vunpack.c.l.b16 %v688
  %v725 = vunpack.c.l.b16 %v689
  %v726 = vunpack.c.l.b16 %v690
  %v727 = vpack.c.b16 %v712, %v711
  %v728 = vpack.c.b16 %v714, %v713
  %v729 = vpack.c.b16 %v716, %v715
  %v730 = vpack.c.b16 %v718, %v717
  %v731 = vpack.c.b16 %v720, %v719
  %v732 = vpack.c.b16 %v722, %v721
  %v733 = vpack.c.b16 %v724, %v723
  %v734 = vpack.c.b16 %v726, %v725
  %743 = vmatprep.subr.bf16.mxu0 0
  %744 = vmatpush1.bf16.msra.mxu0 %v727
  %745 = vmatprep.subr.bf16.mxu0 0
  %746 = vmatpush1.bf16.msra.mxu0 %v728
  %747 = vmatprep.subr.bf16.mxu0 0
  %748 = vmatpush1.bf16.msra.mxu0 %v729
  %749 = vmatprep.subr.bf16.mxu0 0
  %750 = vmatpush1.bf16.msra.mxu0 %v730
  %751 = vmatprep.subr.bf16.mxu0 0
  %752 = vmatpush1.bf16.msra.mxu0 %v731
  %753 = vmatprep.subr.bf16.mxu0 0
  %754 = vmatpush1.bf16.msra.mxu0 %v732
  %755 = vmatprep.subr.bf16.mxu0 0
  %756 = vmatpush1.bf16.msra.mxu0 %v733
  %757 = vmatprep.subr.bf16.mxu0 0
  %758 = vmatpush1.bf16.msra.mxu0 %v734
  %759 = vmatprep.subr.bf16.mxu0 0
  %760 = vmatpush1.bf16.msra.mxu0 0
  %761 = vmatprep.subr.bf16.mxu0 0
  %762 = vmatpush1.bf16.msra.mxu0 0
  %763 = vmatprep.subr.bf16.mxu0 0
  %764 = vmatpush1.bf16.msra.mxu0 0
  %765 = vmatprep.subr.bf16.mxu0 0
  %766 = vmatpush1.bf16.msra.mxu0 0
  %767 = vmatprep.subr.bf16.mxu0 0
  %768 = vmatpush1.bf16.msra.mxu0 0
  %769 = vmatprep.subr.bf16.mxu0 0
  %770 = vmatpush1.bf16.msra.mxu0 0
  %771 = vmatprep.subr.bf16.mxu0 0
  %772 = vmatpush1.bf16.msra.mxu0 0
  %773 = vmatprep.subr.bf16.mxu0 0
  %774 = vmatpush1.bf16.msra.mxu0 0
  %775 = vmatprep.mubr.bf16.mxu0 0
  %776 = vmatmul.mubr.bf16.gmra.mrb[0].mxu0 %v659
  %v777 = vpop.f32.mrb[0].mxu0
  %v778 = vadd.f32 %v694, %v777
  %v779 = vpop.f32.mrb[0].mxu0
  %v780 = vpop.f32.mrb[0].mxu0
  %v781 = vadd.f32 %v694, %v780
  %v782 = vpop.f32.mrb[0].mxu0
  %783 = vmatprep.mubr.bf16.mxu0 0
  %784 = vmatmul.mubr.bf16.gmra.mrb[0].mxu0 %v660
  %v785 = vpop.f32.mrb[0].mxu0
  %v786 = vadd.f32 %v694, %v785
  %v787 = vpop.f32.mrb[0].mxu0
  %v788 = vpop.f32.mrb[0].mxu0
  %v789 = vadd.f32 %v694, %v788
  %v790 = vpop.f32.mrb[0].mxu0
  %791 = vmatprep.mubr.bf16.mxu0 0
  %792 = vmatmul.mubr.bf16.gmra.mrb[0].mxu0 %v661
  %v793 = vpop.f32.mrb[0].mxu0
  %v794 = vadd.f32 %v694, %v793
  %v795 = vpop.f32.mrb[0].mxu0
  %v796 = vpop.f32.mrb[0].mxu0
  %v797 = vadd.f32 %v694, %v796
  %v798 = vpop.f32.mrb[0].mxu0
  %799 = vmatprep.mubr.bf16.mxu0 0
  %800 = vmatmul.mubr.bf16.gmra.mrb[0].mxu0 %v662
  %v801 = vpop.f32.mrb[0].mxu0
  %v802 = vadd.f32 %v694, %v801
  %v803 = vpop.f32.mrb[0].mxu0
  %v804 = vpop.f32.mrb[0].mxu0
  %v805 = vadd.f32 %v694, %v804
  %v806 = vpop.f32.mrb[0].mxu0
  %807 = vmatprep.mubr.bf16.mxu0 0
  %808 = vmatmul.mubr.bf16.gmra.mrb[0].mxu0 %v663
  %v809 = vpop.f32.mrb[0].mxu0
  %v810 = vadd.f32 %v694, %v809
  %v811 = vpop.f32.mrb[0].mxu0
  %v812 = vpop.f32.mrb[0].mxu0
  %v813 = vadd.f32 %v694, %v812
  %v814 = vpop.f32.mrb[0].mxu0
  %815 = vmatprep.mubr.bf16.mxu0 0
  %816 = vmatmul.mubr.bf16.gmra.mrb[0].mxu0 %v664
  %v817 = vpop.f32.mrb[0].mxu0
  %v818 = vadd.f32 %v694, %v817
  %v819 = vpop.f32.mrb[0].mxu0
  %v820 = vpop.f32.mrb[0].mxu0
  %v821 = vadd.f32 %v694, %v820
  %v822 = vpop.f32.mrb[0].mxu0
  %823 = vmatprep.mubr.bf16.mxu0 0
  %824 = vmatmul.mubr.bf16.gmra.mrb[0].mxu0 %v665
  %v825 = vpop.f32.mrb[0].mxu0
  %v826 = vadd.f32 %v694, %v825
  %v827 = vpop.f32.mrb[0].mxu0
  %v828 = vpop.f32.mrb[0].mxu0
  %v829 = vadd.f32 %v694, %v828
  %v830 = vpop.f32.mrb[0].mxu0
  %831 = vmatprep.mubr.bf16.mxu0 0
  %832 = vmatmul.mubr.bf16.gmra.mrb[0].mxu0 %v666
  %v833 = vpop.f32.mrb[0].mxu0
  %v834 = vadd.f32 %v694, %v833
  %v835 = vpop.f32.mrb[0].mxu0
  %v836 = vpop.f32.mrb[0].mxu0
  %v837 = vadd.f32 %v694, %v836
  %v838 = vpop.f32.mrb[0].mxu0
  %839 = vmatprep.mubr.bf16.mxu0 0
  %840 = vmatmul.mubr.bf16.gmra.mrb[0].mxu0 %v667
  %v841 = vpop.f32.mrb[0].mxu0
  %v842 = vadd.f32 %v694, %v841
  %v843 = vpop.f32.mrb[0].mxu0
  %v844 = vpop.f32.mrb[0].mxu0
  %v845 = vadd.f32 %v694, %v844
  %v846 = vpop.f32.mrb[0].mxu0
  %847 = vmatprep.mubr.bf16.mxu0 0
  %848 = vmatmul.mubr.bf16.gmra.mrb[0].mxu0 %v668
  %v849 = vpop.f32.mrb[0].mxu0
  %v850 = vadd.f32 %v694, %v849
  %v851 = vpop.f32.mrb[0].mxu0
  %v852 = vpop.f32.mrb[0].mxu0
  %v853 = vadd.f32 %v694, %v852
  %v854 = vpop.f32.mrb[0].mxu0
  %855 = vmatprep.mubr.bf16.mxu0 0
  %856 = vmatmul.mubr.bf16.gmra.mrb[0].mxu0 %v669
  %v857 = vpop.f32.mrb[0].mxu0
  %v858 = vadd.f32 %v694, %v857
  %v859 = vpop.f32.mrb[0].mxu0
  %v860 = vpop.f32.mrb[0].mxu0
  %v861 = vadd.f32 %v694, %v860
  %v862 = vpop.f32.mrb[0].mxu0
  %863 = vmatprep.mubr.bf16.mxu0 0
  %864 = vmatmul.mubr.bf16.gmra.mrb[0].mxu0 %v670
  %v865 = vpop.f32.mrb[0].mxu0
  %v866 = vadd.f32 %v694, %v865
  %v867 = vpop.f32.mrb[0].mxu0
  %v868 = vpop.f32.mrb[0].mxu0
  %v869 = vadd.f32 %v694, %v868
  %v870 = vpop.f32.mrb[0].mxu0
  %871 = vmatprep.mubr.bf16.mxu0 0
  %872 = vmatmul.mubr.bf16.gmra.mrb[0].mxu0 %v671
  %v873 = vpop.f32.mrb[0].mxu0
  %v874 = vadd.f32 %v694, %v873
  %v875 = vpop.f32.mrb[0].mxu0
  %v876 = vpop.f32.mrb[0].mxu0
  %v877 = vadd.f32 %v694, %v876
  %v878 = vpop.f32.mrb[0].mxu0
  %879 = vmatprep.mubr.bf16.mxu0 0
  %880 = vmatmul.mubr.bf16.gmra.mrb[0].mxu0 %v672
  %v881 = vpop.f32.mrb[0].mxu0
  %v882 = vadd.f32 %v694, %v881
  %v883 = vpop.f32.mrb[0].mxu0
  %v884 = vpop.f32.mrb[0].mxu0
  %v885 = vadd.f32 %v694, %v884
  %v886 = vpop.f32.mrb[0].mxu0
  %887 = vmatprep.mubr.bf16.mxu0 0
  %888 = vmatmul.mubr.bf16.gmra.mrb[0].mxu0 %v673
  %v889 = vpop.f32.mrb[0].mxu0
  %v890 = vadd.f32 %v694, %v889
  %v891 = vpop.f32.mrb[0].mxu0
  %v892 = vpop.f32.mrb[0].mxu0
  %v893 = vadd.f32 %v694, %v892
  %v894 = vpop.f32.mrb[0].mxu0
  %895 = vmatprep.mubr.bf16.mxu0 0
  %896 = vmatmul.mubr.bf16.gmra.mrb[0].mxu0 %v674
  %v897 = vpop.f32.mrb[0].mxu0
  %v898 = vadd.f32 %v694, %v897
  %v899 = vpop.f32.mrb[0].mxu0
  %v900 = vpop.f32.mrb[0].mxu0
  %v901 = vadd.f32 %v694, %v900
  %v902 = vpop.f32.mrb[0].mxu0
  %903 = vdwg.mxu0
  %v904 = vmax.f32 %v778, 0.0
  %v905 = vmax.f32 %v781, 0.0
  %v906 = vmax.f32 %v786, 0.0
  %v907 = vmax.f32 %v789, 0.0
  %v908 = vmax.f32 %v794, 0.0
  %v909 = vmax.f32 %v797, 0.0
  %v910 = vmax.f32 %v802, 0.0
  %v911 = vmax.f32 %v805, 0.0
  %v912 = vmax.f32 %v810, 0.0
  %v913 = vmax.f32 %v813, 0.0
  %v914 = vmax.f32 %v818, 0.0
  %v915 = vmax.f32 %v821, 0.0
  %v916 = vmax.f32 %v826, 0.0
  %v917 = vmax.f32 %v829, 0.0
  %v918 = vmax.f32 %v834, 0.0
  %v919 = vmax.f32 %v837, 0.0
  %v920 = vmax.f32 %v842, 0.0
  %v921 = vmax.f32 %v845, 0.0
  %v922 = vmax.f32 %v850, 0.0
  %v923 = vmax.f32 %v853, 0.0
  %v924 = vmax.f32 %v858, 0.0
  %v925 = vmax.f32 %v861, 0.0
  %v926 = vmax.f32 %v866, 0.0
  %v927 = vmax.f32 %v869, 0.0
  %v928 = vmax.f32 %v874, 0.0
  %v929 = vmax.f32 %v877, 0.0
  %v930 = vmax.f32 %v882, 0.0
  %v931 = vmax.f32 %v885, 0.0
  %v932 = vmax.f32 %v890, 0.0
  %v933 = vmax.f32 %v893, 0.0
  %v934 = vmax.f32 %v898, 0.0
  %v935 = vmax.f32 %v901, 0.0
  %v936 = vpack.c.bf16 %v905, %v904
  %v937 = vpack.c.bf16 %v907, %v906
  %v938 = vpack.c.bf16 %v909, %v908
  %v939 = vpack.c.bf16 %v911, %v910
  %v940 = vpack.c.bf16 %v913, %v912
  %v941 = vpack.c.bf16 %v915, %v914
  %v942 = vpack.c.bf16 %v917, %v916
  %v943 = vpack.c.bf16 %v919, %v918
  %v944 = vpack.c.bf16 %v921, %v920
  %v945 = vpack.c.bf16 %v923, %v922
  %v946 = vpack.c.bf16 %v925, %v924
  %v947 = vpack.c.bf16 %v927, %v926
  %v948 = vpack.c.bf16 %v929, %v928
  %v949 = vpack.c.bf16 %v931, %v930
  %v950 = vpack.c.bf16 %v933, %v932
  %v951 = vpack.c.bf16 %v935, %v934
  %v952 = vld [vmem:[%s1 + $0xc0] sm:$0xf]
  %v953 = vld [vmem:[%s1 + $0xc4] sm:$0xf]
  %v954 = vld [vmem:[%s1 + $0xc8] sm:$0xf]
  %v955 = vld [vmem:[%s1 + $0xcc] sm:$0xf]
  %v956 = vld [vmem:[%s1 + $0xd0] sm:$0xf]
  %v957 = vld [vmem:[%s1 + $0xd4] sm:$0xf]
  %v958 = vld [vmem:[%s1 + $0xd8] sm:$0xf]
  %v959 = vld [vmem:[%s1 + $0xdc] sm:$0xf]
  %v960 = vld [vmem:[%s1 + $0xe0] sm:$0xf]
  %v961 = vld [vmem:[%s1 + $0xe4] sm:$0xf]
  %v962 = vld [vmem:[%s1 + $0xe8] sm:$0xf]
  %v963 = vld [vmem:[%s1 + $0xec] sm:$0xf]
  %v964 = vld [vmem:[%s1 + $0xf0] sm:$0xf]
  %v965 = vld [vmem:[%s1 + $0xf4] sm:$0xf]
  %v966 = vld [vmem:[%s1 + $0xf8] sm:$0xf]
  %v967 = vld [vmem:[%s1 + $0xfc] sm:$0xf]
  %v968 = vlaneseq
  %v969 = vshrl.u32 %v968, 7
  %v970 = vsub.s32 3, %v969
  %v971 = vrot.slane %v15, %v970
  %v988 = vunpack.c.l.b16 %v952
  %v989 = vunpack.c.l.b16 %v953
  %v990 = vunpack.c.l.b16 %v954
  %v991 = vunpack.c.l.b16 %v955
  %v992 = vunpack.c.l.b16 %v956
  %v993 = vunpack.c.l.b16 %v957
  %v994 = vunpack.c.l.b16 %v958
  %v995 = vunpack.c.l.b16 %v959
  %v996 = vunpack.c.l.b16 %v960
  %v997 = vunpack.c.l.b16 %v961
  %v998 = vunpack.c.l.b16 %v962
  %v999 = vunpack.c.l.b16 %v963
  %v1000 = vunpack.c.l.b16 %v964
  %v1001 = vunpack.c.l.b16 %v965
  %v1002 = vunpack.c.l.b16 %v966
  %v1003 = vunpack.c.l.b16 %v967
  %v1004 = vpack.c.b16 %v989, %v988
  %v1005 = vpack.c.b16 %v991, %v990
  %v1006 = vpack.c.b16 %v993, %v992
  %v1007 = vpack.c.b16 %v995, %v994
  %v1008 = vpack.c.b16 %v997, %v996
  %v1009 = vpack.c.b16 %v999, %v998
  %v1010 = vpack.c.b16 %v1001, %v1000
  %v1011 = vpack.c.b16 %v1003, %v1002
  %1020 = vmatprep.subr.bf16.mxu0 0
  %1021 = vmatpush1.bf16.msra.mxu0 %v1004
  %1022 = vmatprep.subr.bf16.mxu0 0
  %1023 = vmatpush1.bf16.msra.mxu0 %v1005
  %1024 = vmatprep.subr.bf16.mxu0 0
  %1025 = vmatpush1.bf16.msra.mxu0 %v1006
  %1026 = vmatprep.subr.bf16.mxu0 0
  %1027 = vmatpush1.bf16.msra.mxu0 %v1007
  %1028 = vmatprep.subr.bf16.mxu0 0
  %1029 = vmatpush1.bf16.msra.mxu0 %v1008
  %1030 = vmatprep.subr.bf16.mxu0 0
  %1031 = vmatpush1.bf16.msra.mxu0 %v1009
  %1032 = vmatprep.subr.bf16.mxu0 0
  %1033 = vmatpush1.bf16.msra.mxu0 %v1010
  %1034 = vmatprep.subr.bf16.mxu0 0
  %1035 = vmatpush1.bf16.msra.mxu0 %v1011
  %1036 = vmatprep.subr.bf16.mxu0 0
  %1037 = vmatpush1.bf16.msra.mxu0 0
  %1038 = vmatprep.subr.bf16.mxu0 0
  %1039 = vmatpush1.bf16.msra.mxu0 0
  %1040 = vmatprep.subr.bf16.mxu0 0
  %1041 = vmatpush1.bf16.msra.mxu0 0
  %1042 = vmatprep.subr.bf16.mxu0 0
  %1043 = vmatpush1.bf16.msra.mxu0 0
  %1044 = vmatprep.subr.bf16.mxu0 0
  %1045 = vmatpush1.bf16.msra.mxu0 0
  %1046 = vmatprep.subr.bf16.mxu0 0
  %1047 = vmatpush1.bf16.msra.mxu0 0
  %1048 = vmatprep.subr.bf16.mxu0 0
  %1049 = vmatpush1.bf16.msra.mxu0 0
  %1050 = vmatprep.subr.bf16.mxu0 0
  %1051 = vmatpush1.bf16.msra.mxu0 0
  %1052 = vmatprep.mubr.bf16.mxu0 0
  %1053 = vmatmul.mubr.bf16.gmra.mrb[0].mxu0 %v936
  %v1054 = vpop.f32.mrb[0].mxu0
  %v1055 = vadd.f32 %v971, %v1054
  %v1056 = vpop.f32.mrb[0].mxu0
  %v1057 = vpop.f32.mrb[0].mxu0
  %v1058 = vadd.f32 %v971, %v1057
  %v1059 = vpop.f32.mrb[0].mxu0
  %1060 = vmatprep.mubr.bf16.mxu0 0
  %1061 = vmatmul.mubr.bf16.gmra.mrb[0].mxu0 %v937
  %v1062 = vpop.f32.mrb[0].mxu0
  %v1063 = vadd.f32 %v971, %v1062
  %v1064 = vpop.f32.mrb[0].mxu0
  %v1065 = vpop.f32.mrb[0].mxu0
  %v1066 = vadd.f32 %v971, %v1065
  %v1067 = vpop.f32.mrb[0].mxu0
  %1068 = vmatprep.mubr.bf16.mxu0 0
  %1069 = vmatmul.mubr.bf16.gmra.mrb[0].mxu0 %v938
  %v1070 = vpop.f32.mrb[0].mxu0
  %v1071 = vadd.f32 %v971, %v1070
  %v1072 = vpop.f32.mrb[0].mxu0
  %v1073 = vpop.f32.mrb[0].mxu0
  %v1074 = vadd.f32 %v971, %v1073
  %v1075 = vpop.f32.mrb[0].mxu0
  %1076 = vmatprep.mubr.bf16.mxu0 0
  %1077 = vmatmul.mubr.bf16.gmra.mrb[0].mxu0 %v939
  %v1078 = vpop.f32.mrb[0].mxu0
  %v1079 = vadd.f32 %v971, %v1078
  %v1080 = vpop.f32.mrb[0].mxu0
  %v1081 = vpop.f32.mrb[0].mxu0
  %v1082 = vadd.f32 %v971, %v1081
  %v1083 = vpop.f32.mrb[0].mxu0
  %1084 = vmatprep.mubr.bf16.mxu0 0
  %1085 = vmatmul.mubr.bf16.gmra.mrb[0].mxu0 %v940
  %v1086 = vpop.f32.mrb[0].mxu0
  %v1087 = vadd.f32 %v971, %v1086
  %v1088 = vpop.f32.mrb[0].mxu0
  %v1089 = vpop.f32.mrb[0].mxu0
  %v1090 = vadd.f32 %v971, %v1089
  %v1091 = vpop.f32.mrb[0].mxu0
  %1092 = vmatprep.mubr.bf16.mxu0 0
  %1093 = vmatmul.mubr.bf16.gmra.mrb[0].mxu0 %v941
  %v1094 = vpop.f32.mrb[0].mxu0
  %v1095 = vadd.f32 %v971, %v1094
  %v1096 = vpop.f32.mrb[0].mxu0
  %v1097 = vpop.f32.mrb[0].mxu0
  %v1098 = vadd.f32 %v971, %v1097
  %v1099 = vpop.f32.mrb[0].mxu0
  %1100 = vmatprep.mubr.bf16.mxu0 0
  %1101 = vmatmul.mubr.bf16.gmra.mrb[0].mxu0 %v942
  %v1102 = vpop.f32.mrb[0].mxu0
  %v1103 = vadd.f32 %v971, %v1102
  %v1104 = vpop.f32.mrb[0].mxu0
  %v1105 = vpop.f32.mrb[0].mxu0
  %v1106 = vadd.f32 %v971, %v1105
  %v1107 = vpop.f32.mrb[0].mxu0
  %1108 = vmatprep.mubr.bf16.mxu0 0
  %1109 = vmatmul.mubr.bf16.gmra.mrb[0].mxu0 %v943
  %v1110 = vpop.f32.mrb[0].mxu0
  %v1111 = vadd.f32 %v971, %v1110
  %v1112 = vpop.f32.mrb[0].mxu0
  %v1113 = vpop.f32.mrb[0].mxu0
  %v1114 = vadd.f32 %v971, %v1113
  %v1115 = vpop.f32.mrb[0].mxu0
  %1116 = vmatprep.mubr.bf16.mxu0 0
  %1117 = vmatmul.mubr.bf16.gmra.mrb[0].mxu0 %v944
  %v1118 = vpop.f32.mrb[0].mxu0
  %v1119 = vadd.f32 %v971, %v1118
  %v1120 = vpop.f32.mrb[0].mxu0
  %v1121 = vpop.f32.mrb[0].mxu0
  %v1122 = vadd.f32 %v971, %v1121
  %v1123 = vpop.f32.mrb[0].mxu0
  %1124 = vmatprep.mubr.bf16.mxu0 0
  %1125 = vmatmul.mubr.bf16.gmra.mrb[0].mxu0 %v945
  %v1126 = vpop.f32.mrb[0].mxu0
  %v1127 = vadd.f32 %v971, %v1126
  %v1128 = vpop.f32.mrb[0].mxu0
  %v1129 = vpop.f32.mrb[0].mxu0
  %v1130 = vadd.f32 %v971, %v1129
  %v1131 = vpop.f32.mrb[0].mxu0
  %1132 = vmatprep.mubr.bf16.mxu0 0
  %1133 = vmatmul.mubr.bf16.gmra.mrb[0].mxu0 %v946
  %v1134 = vpop.f32.mrb[0].mxu0
  %v1135 = vadd.f32 %v971, %v1134
  %v1136 = vpop.f32.mrb[0].mxu0
  %v1137 = vpop.f32.mrb[0].mxu0
  %v1138 = vadd.f32 %v971, %v1137
  %v1139 = vpop.f32.mrb[0].mxu0
  %1140 = vmatprep.mubr.bf16.mxu0 0
  %1141 = vmatmul.mubr.bf16.gmra.mrb[0].mxu0 %v947
  %v1142 = vpop.f32.mrb[0].mxu0
  %v1143 = vadd.f32 %v971, %v1142
  %v1144 = vpop.f32.mrb[0].mxu0
  %v1145 = vpop.f32.mrb[0].mxu0
  %v1146 = vadd.f32 %v971, %v1145
  %v1147 = vpop.f32.mrb[0].mxu0
  %1148 = vmatprep.mubr.bf16.mxu0 0
  %1149 = vmatmul.mubr.bf16.gmra.mrb[0].mxu0 %v948
  %v1150 = vpop.f32.mrb[0].mxu0
  %v1151 = vadd.f32 %v971, %v1150
  %v1152 = vpop.f32.mrb[0].mxu0
  %v1153 = vpop.f32.mrb[0].mxu0
  %v1154 = vadd.f32 %v971, %v1153
  %v1155 = vpop.f32.mrb[0].mxu0
  %1156 = vmatprep.mubr.bf16.mxu0 0
  %1157 = vmatmul.mubr.bf16.gmra.mrb[0].mxu0 %v949
  %v1158 = vpop.f32.mrb[0].mxu0
  %v1159 = vadd.f32 %v971, %v1158
  %v1160 = vpop.f32.mrb[0].mxu0
  %v1161 = vpop.f32.mrb[0].mxu0
  %v1162 = vadd.f32 %v971, %v1161
  %v1163 = vpop.f32.mrb[0].mxu0
  %1164 = vmatprep.mubr.bf16.mxu0 0
  %1165 = vmatmul.mubr.bf16.gmra.mrb[0].mxu0 %v950
  %v1166 = vpop.f32.mrb[0].mxu0
  %v1167 = vadd.f32 %v971, %v1166
  %v1168 = vpop.f32.mrb[0].mxu0
  %v1169 = vpop.f32.mrb[0].mxu0
  %v1170 = vadd.f32 %v971, %v1169
  %v1171 = vpop.f32.mrb[0].mxu0
  %1172 = vmatprep.mubr.bf16.mxu0 0
  %1173 = vmatmul.mubr.bf16.gmra.mrb[0].mxu0 %v951
  %v1174 = vpop.f32.mrb[0].mxu0
  %v1175 = vadd.f32 %v971, %v1174
  %v1176 = vpop.f32.mrb[0].mxu0
  %v1177 = vpop.f32.mrb[0].mxu0
  %v1178 = vadd.f32 %v971, %v1177
  %v1179 = vpop.f32.mrb[0].mxu0
  %1180 = vdwg.mxu0
  %vm1181 = vcmask 31744
  %1182 = vst.msk [vmem:[%s3] sm:$0xff] %vm1181, %v1055
  %1183 = vst.msk [vmem:[%s3 + $0x8] sm:$0xff] %vm1181, %v1058
  %1184 = vst.msk [vmem:[%s3 + $0x10] sm:$0xff] %vm1181, %v1063
  %1185 = vst.msk [vmem:[%s3 + $0x18] sm:$0xff] %vm1181, %v1066
  %1186 = vst.msk [vmem:[%s3 + $0x20] sm:$0xff] %vm1181, %v1071
  %1187 = vst.msk [vmem:[%s3 + $0x28] sm:$0xff] %vm1181, %v1074
  %1188 = vst.msk [vmem:[%s3 + $0x30] sm:$0xff] %vm1181, %v1079
  %1189 = vst.msk [vmem:[%s3 + $0x38] sm:$0xff] %vm1181, %v1082
  %1190 = vst.msk [vmem:[%s3 + $0x40] sm:$0xff] %vm1181, %v1087
  %1191 = vst.msk [vmem:[%s3 + $0x48] sm:$0xff] %vm1181, %v1090
  %1192 = vst.msk [vmem:[%s3 + $0x50] sm:$0xff] %vm1181, %v1095
  %1193 = vst.msk [vmem:[%s3 + $0x58] sm:$0xff] %vm1181, %v1098
  %1194 = vst.msk [vmem:[%s3 + $0x60] sm:$0xff] %vm1181, %v1103
  %1195 = vst.msk [vmem:[%s3 + $0x68] sm:$0xff] %vm1181, %v1106
  %1196 = vst.msk [vmem:[%s3 + $0x70] sm:$0xff] %vm1181, %v1111
  %1197 = vst.msk [vmem:[%s3 + $0x78] sm:$0xff] %vm1181, %v1114
  %1198 = vst.msk [vmem:[%s3 + $0x80] sm:$0xff] %vm1181, %v1119
  %1199 = vst.msk [vmem:[%s3 + $0x88] sm:$0xff] %vm1181, %v1122
  %1200 = vst.msk [vmem:[%s3 + $0x90] sm:$0xff] %vm1181, %v1127
  %1201 = vst.msk [vmem:[%s3 + $0x98] sm:$0xff] %vm1181, %v1130
  %1202 = vst.msk [vmem:[%s3 + $0xa0] sm:$0xff] %vm1181, %v1135
  %1203 = vst.msk [vmem:[%s3 + $0xa8] sm:$0xff] %vm1181, %v1138
  %1204 = vst.msk [vmem:[%s3 + $0xb0] sm:$0xff] %vm1181, %v1143
  %1205 = vst.msk [vmem:[%s3 + $0xb8] sm:$0xff] %vm1181, %v1146
  %1206 = vst.msk [vmem:[%s3 + $0xc0] sm:$0xff] %vm1181, %v1151
  %1207 = vst.msk [vmem:[%s3 + $0xc8] sm:$0xff] %vm1181, %v1154
  %1208 = vst.msk [vmem:[%s3 + $0xd0] sm:$0xff] %vm1181, %v1159
  %1209 = vst.msk [vmem:[%s3 + $0xd8] sm:$0xff] %vm1181, %v1162
  %1210 = vst.msk [vmem:[%s3 + $0xe0] sm:$0xff] %vm1181, %v1167
  %1211 = vst.msk [vmem:[%s3 + $0xe8] sm:$0xff] %vm1181, %v1170
  %1212 = vst.msk [vmem:[%s3 + $0xf0] sm:$0xff] %vm1181, %v1175
  %1213 = vst.msk [vmem:[%s3 + $0xf8] sm:$0xff] %vm1181, %v1178
  // Predicated region
  $region14: #{densenet_forward.1} parent=0 // pred_check
    _
  $region15: #{densenet_forward.1} parent=0 // pred_check_branch
    %1215 = sbr.rel (0) target = $region17
  $region16: #{densenet_forward.1} parent=0 // pred_region
    _
  $region17: #{densenet_forward.1} parent=0 // pred_fallthru
    _
  // Predicated region
  $region18: #{densenet_forward.1} parent=0 // pred_check
    _
  $region19: #{densenet_forward.1} parent=0 // pred_check_branch
    %1217 = sbr.rel (0) target = $region21
  $region20: #{densenet_forward.1} parent=0 // pred_region
    _
  $region21: #{densenet_forward.1} parent=0 // pred_fallthru
    _

</llo_original>
